<compile_context>
chip_gen: v5e
topology: v5e:2x2
jax: 0.10.0
libtpu: 0.0.40
codegen_flags: <defaults>
</compile_context>

<pallas_src>
import functools
from typing import NamedTuple

import jax
import jax.numpy as jnp
from jax.experimental import pallas as pl
from jax.experimental.pallas import tpu as pltpu

LANE = 128


class QFnMeta(NamedTuple):
    n_dim_obs: int
    n_dim_action: int
    n_hidden_channels: int
    n_hidden_layers: int


def _round_up(x, m):
    return ((x + m - 1) // m) * m


def _dims(meta: QFnMeta):
    """Static padded dims + column offsets of the packed weight matrix."""
    OBS_P = _round_up(meta.n_dim_obs, LANE)
    ACT_P = _round_up(meta.n_dim_action, LANE)
    H_P = _round_up(meta.n_hidden_channels, LANE)
    L = meta.n_hidden_layers
    if L >= 2:
        pack_rows = H_P
        col_w_obs = 0
        col_w1_h = OBS_P
        col_w1_a = OBS_P + H_P
        col_hidden = OBS_P + H_P + ACT_P
        col_w_out = col_hidden + (L - 2) * H_P
        total_cols = col_w_out + LANE        # w_out stored in column 0 of a 128-wide slab
        n_bias = L + 1                       # b_obs, b1, hidden..., b_out(scalar)
    else:
        # Degenerate case: the single mlp layer IS the 1-dim output.
        pack_rows = max(H_P, ACT_P)
        col_w_obs = 0
        col_w1_h = OBS_P                     # column 0 of a 128-wide slab
        col_w1_a = OBS_P + LANE              # column 0 of a 128-wide slab
        col_hidden = None
        col_w_out = None
        total_cols = OBS_P + 2 * LANE
        n_bias = 2                           # b_obs, b1(scalar)
    return dict(OBS_P=OBS_P, ACT_P=ACT_P, H_P=H_P, PACK_ROWS=pack_rows,
                col_w_obs=col_w_obs, col_w1_h=col_w1_h, col_w1_a=col_w1_a,
                col_hidden=col_hidden, col_w_out=col_w_out,
                total_cols=total_cols, n_bias=n_bias)


# ---------------------------------------------------------------------------
# Parameters: natural (torch-layout) init + packing into two arrays.
# ---------------------------------------------------------------------------

def init_params(key, meta: QFnMeta, last_wscale=1.0):
    """Returns [(W, b), ...] with W in torch layout [out_features, in_features]."""
    L, H = meta.n_hidden_layers, meta.n_hidden_channels
    sizes = [(H, meta.n_dim_obs)]
    sizes.append((H if L >= 2 else 1, H + meta.n_dim_action))
    sizes += [(H, H)] * (L - 2)
    if L >= 2:
        sizes.append((1, H))
    keys = jax.random.split(key, 2 * len(sizes))
    params = []
    for i, (fout, fin) in enumerate(sizes):
        scale = last_wscale if i == len(sizes) - 1 else 1.0
        w = jax.random.normal(keys[2 * i], (fout, fin), jnp.float32) * (scale / (fin ** 0.5))
        b = jax.random.normal(keys[2 * i + 1], (fout,), jnp.float32) * 0.1
        params.append((w, b))
    return params


def pack_params(params, meta: QFnMeta, use_bf16=False):
    """Packs all weights into one [rows, cols] matrix and biases into one matrix.

    Weights stay in torch [out, in] orientation (the kernel computes W @ x^T),
    zero-padded to 128-lane tiles.  Biases are stored as columns (f32 always).
    """
    d = _dims(meta)
    L, H, A = meta.n_hidden_layers, meta.n_hidden_channels, meta.n_dim_action
    wdt = jnp.bfloat16 if use_bf16 else jnp.float32

    w_pack = jnp.zeros((d["PACK_ROWS"], d["total_cols"]), wdt)
    b_pack = jnp.zeros((d["PACK_ROWS"], d["n_bias"]), jnp.float32)

    w0, b0 = params[0]                                   # (H, n_obs), (H,)
    w_pack = w_pack.at[:H, :meta.n_dim_obs].set(w0.astype(wdt))
    b_pack = b_pack.at[:H, 0].set(b0)

    w1, b1 = params[1]                                   # (out1, H + A)
    if L >= 2:
        w_pack = w_pack.at[:H, d["col_w1_h"]:d["col_w1_h"] + H].set(w1[:, :H].astype(wdt))
        w_pack = w_pack.at[:H, d["col_w1_a"]:d["col_w1_a"] + A].set(w1[:, H:].astype(wdt))
        b_pack = b_pack.at[:H, 1].set(b1)
        for li in range(L - 2):
            wl, bl = params[2 + li]
            c = d["col_hidden"] + li * d["H_P"]
            w_pack = w_pack.at[:H, c:c + H].set(wl.astype(wdt))
            b_pack = b_pack.at[:H, 2 + li].set(bl)
        w_out, b_out = params[-1]                        # (1, H), (1,)
        w_pack = w_pack.at[:H, d["col_w_out"]].set(w_out[0].astype(wdt))
        b_pack = b_pack.at[0, L].set(b_out[0])
    else:
        w_pack = w_pack.at[:H, d["col_w1_h"]].set(w1[0, :H].astype(wdt))
        w_pack = w_pack.at[:A, d["col_w1_a"]].set(w1[0, H:].astype(wdt))
        b_pack = b_pack.at[0, 1].set(b1[0])
    return w_pack, b_pack


# ---------------------------------------------------------------------------
# Kernel.
# ---------------------------------------------------------------------------

def _build_kernel(meta: QFnMeta):
    d = _dims(meta)
    L = meta.n_hidden_layers
    OBS_P, ACT_P, H_P = d["OBS_P"], d["ACT_P"], d["H_P"]

    def kernel(s_ref, a_ref, w_ref, b_ref, o_ref):
        # Activations are carried as [features, batch]: batch on the lane axis.
        sT = s_ref[...]                       # (OBS_P, TILE_B) f32
        aT = a_ref[...]                       # (ACT_P, TILE_B) f32
        wdt = w_ref.dtype                     # f32 or bf16 (operands cast per-dot)

        def mm(col, k, x):
            w = w_ref[:, col:col + k]         # static slice of the packed weights
            return jnp.dot(w, x.astype(wdt), preferred_element_type=jnp.float32)

        # obs_mlp + relu
        h = jnp.maximum(mm(d["col_w_obs"], OBS_P, sT) + b_ref[:, 0:1], 0.0)

        if L >= 2:
            # first mlp layer on concat([h, action]) == split matmul
            z = (mm(d["col_w1_h"], H_P, h) + mm(d["col_w1_a"], ACT_P, aT)
                 + b_ref[:, 1:2])
            h = jnp.maximum(z, 0.0)
            for li in range(L - 2):
                c = d["col_hidden"] + li * H_P
                h = jnp.maximum(mm(c, H_P, h) + b_ref[:, 2 + li:3 + li], 0.0)
            # Output layer H -> 1: VPU multiply + sublane reduce (no N=1 matmul),
            # result is already lane-dense (1, TILE_B).
            w_out = w_ref[:, d["col_w_out"]:d["col_w_out"] + 1].astype(jnp.float32)
            q = jnp.sum(h * w_out, axis=0, keepdims=True) + b_ref[0:1, L:L + 1]
        else:
            # mlp has no hidden layers: its single Linear is the 1-dim output.
            w1h = w_ref[:, d["col_w1_h"]:d["col_w1_h"] + 1].astype(jnp.float32)
            w1a = w_ref[0:ACT_P, d["col_w1_a"]:d["col_w1_a"] + 1].astype(jnp.float32)
            q = (jnp.sum(h * w1h, axis=0, keepdims=True)
                 + jnp.sum(aT * w1a, axis=0, keepdims=True)
                 + b_ref[0:1, 1:2])

        o_ref[...] = q                        # lane-dense (1, TILE_B) store

    return kernel


@functools.partial(jax.jit, static_argnames=("meta", "max_tile_b"))
def fc_late_action_saq_forward(state, action, w_pack, b_pack, meta: QFnMeta,
                               max_tile_b=512):
    """state: [B, n_dim_obs] f32, action: [B, n_dim_action] f32 -> [B, 1] f32."""
    d = _dims(meta)
    OBS_P, ACT_P, H_P, R = d["OBS_P"], d["ACT_P"], d["H_P"], d["PACK_ROWS"]
    L = meta.n_hidden_layers
    B = state.shape[0]

    tile_b = min(max_tile_b, _round_up(B, LANE))     # lane-multiple batch tile
    b_pad = _round_up(B, tile_b)
    grid = (b_pad // tile_b,)

    def pad_t(x, cols_p):                            # (B, c) -> (cols_p, b_pad)
        xp = jnp.pad(x.astype(jnp.float32),
                     ((0, b_pad - x.shape[0]), (0, cols_p - x.shape[1])))
        return xp.T

    sT = pad_t(state, OBS_P)
    aT = pad_t(action, ACT_P)

    C = w_pack.shape[1]
    NB = b_pack.shape[1]

    mm_cols = OBS_P + ((H_P + ACT_P + (L - 2) * H_P) if L >= 2 else 0)
    flops = int(2 * b_pad * R * (mm_cols + 2))       # matmuls + final reduce (approx.)
    bytes_accessed = int((sT.size + aT.size + b_pad) * 4
                         + w_pack.size * w_pack.dtype.itemsize
                         + b_pack.size * 4)

    out = pl.pallas_call(
        _build_kernel(meta),
        out_shape=jax.ShapeDtypeStruct((1, b_pad), jnp.float32),
        grid=grid,
        in_specs=[
            pl.BlockSpec((OBS_P, tile_b), lambda i: (0, i)),   # state^T (batch-tiled)
            pl.BlockSpec((ACT_P, tile_b), lambda i: (0, i)),   # action^T (batch-tiled)
            pl.BlockSpec((R, C), lambda i: (0, 0)),            # packed weights (resident)
            pl.BlockSpec((R, NB), lambda i: (0, 0)),           # packed biases (resident)
        ],
        out_specs=pl.BlockSpec((1, tile_b), lambda i: (0, i)), # lane-dense q values
        compiler_params=pltpu.CompilerParams(
            dimension_semantics=("parallel",),
            vmem_limit_bytes=32 * 1024 * 1024),
        cost_estimate=pl.CostEstimate(flops=flops, transcendentals=0,
                                      bytes_accessed=bytes_accessed),
    )(sT, aT, w_pack, b_pack)

    return out[0, :B].reshape(B, 1)


# ---------------------------------------------------------------------------
# Pure-JAX reference of the PyTorch forward.
# ---------------------------------------------------------------------------

def reference_forward(state, action, params):
    hi = jax.lax.Precision.HIGHEST
    w0, b0 = params[0]
    h = jnp.maximum(jnp.dot(state, w0.T, precision=hi) + b0, 0.0)
    h = jnp.concatenate([h, action], axis=1)
    rest = params[1:]
    for i, (w, b) in enumerate(rest):
        h = jnp.dot(h, w.T, precision=hi) + b
        if i < len(rest) - 1:
            h = jnp.maximum(h, 0.0)
    return h


if __name__ == "__main__":
    # (n_dim_obs, n_dim_action, H, n_hidden_layers, batch, max_tile_b, use_bf16, tol)
    configs = [
        (16, 6, 32, 2, 300, 128, False, 1e-3),   # multi-step grid + batch padding
        (16, 6, 32, 3, 64, 512, False, 1e-3),    # extra hidden layer, B < tile
        (16, 6, 32, 1, 40, 512, False, 1e-3),    # degenerate L == 1 path
        (16, 6, 32, 2, 300, 256, True, 1e-1),    # bf16 matmul operands (f32 accum)
    ]

    key = jax.random.PRNGKey(0)
    for n_obs, n_act, H, L, B, mt, bf16, tol in configs:
        meta = QFnMeta(n_obs, n_act, H, L)
        key, k_s, k_a, k_p = jax.random.split(key, 4)
        state = jax.random.normal(k_s, (B, n_obs), jnp.float32)
        action = jax.random.normal(k_a, (B, n_act), jnp.float32)

        params = init_params(k_p, meta, last_wscale=1.0)
        w_pack, b_pack = pack_params(params, meta, use_bf16=bf16)

        out = fc_late_action_saq_forward(state, action, w_pack, b_pack,
                                         meta=meta, max_tile_b=mt)
        out = jax.block_until_ready(out)

        ref = reference_forward(state, action, params)
        assert out.shape == (B, 1)
        assert jnp.allclose(out, ref, atol=tol, rtol=tol), (L, B, bf16, out[:4], ref[:4])

    print("KERNEL_OK")
</pallas_src>

<mosaic_0001>
module attributes {stable_mosaic.version = 11 : i64} {
  func.func @kernel(%arg0: i32, %arg1: memref<128x128xf32, #tpu.memory_space<vmem>>, %arg2: memref<128x128xf32, #tpu.memory_space<vmem>>, %arg3: memref<128x512xf32, #tpu.memory_space<vmem>>, %arg4: memref<128x3xf32, #tpu.memory_space<vmem>>, %arg5: memref<1x128xf32, #tpu.memory_space<vmem>>) attributes {dimension_semantics = [#tpu.dimension_semantics<parallel>], iteration_bounds = array<i64: 3>, scalar_prefetch = 0 : i64, scratch_operands = 0 : i64, tpu.core_type = #tpu.core_type<tc>, window_params = [{transform_indices = @transform_0, window_bounds = array<i64: 128, 128>}, {transform_indices = @transform_1, window_bounds = array<i64: 128, 128>}, {pipeline_mode = #tpu.pipeline_mode<synchronous>, transform_indices = @transform_2, window_bounds = array<i64: 128, 512>}, {pipeline_mode = #tpu.pipeline_mode<synchronous>, transform_indices = @transform_3, window_bounds = array<i64: 128, 3>}, {transform_indices = @transform_4, window_bounds = array<i64: 1, 128>}]} {
    %c0 = arith.constant 0 : index
    %c0_0 = arith.constant 0 : index
    %0 = vector.load %arg1[%c0, %c0_0] : memref<128x128xf32, #tpu.memory_space<vmem>>, vector<128x128xf32>
    %c0_1 = arith.constant 0 : index
    %c0_2 = arith.constant 0 : index
    %1 = vector.load %arg2[%c0_1, %c0_2] : memref<128x128xf32, #tpu.memory_space<vmem>>, vector<128x128xf32>
    %c0_3 = arith.constant 0 : index
    %c0_4 = arith.constant 0 : index
    %2 = vector.load %arg3[%c0_3, %c0_4] : memref<128x512xf32, #tpu.memory_space<vmem>>, vector<128x128xf32>
    %cst = arith.constant dense<0.000000e+00> : vector<128x128xf32>
    %3 = tpu.matmul %2, %0, %cst {dimension_numbers = #tpu.dot_dimension_numbers<[1], [0], [0], [1], [0, 0, 1, 1], [], []>} : vector<128x128xf32>, vector<128x128xf32>, vector<128x128xf32> -> vector<128x128xf32>
    %c0_5 = arith.constant 0 : index
    %c0_6 = arith.constant 0 : index
    %4 = vector.load %arg4[%c0_5, %c0_6] : memref<128x3xf32, #tpu.memory_space<vmem>>, vector<128x1xf32>
    %5 = vector.broadcast %4 : vector<128x1xf32> to vector<128x128xf32>
    %6 = arith.addf %3, %5 : vector<128x128xf32>
    %cst_7 = arith.constant 0.000000e+00 : f32
    %7 = vector.broadcast %cst_7 : f32 to vector<128x128xf32>
    %8 = arith.maximumf %6, %7 : vector<128x128xf32>
    %c0_8 = arith.constant 0 : index
    %c128 = arith.constant 128 : index
    %9 = vector.load %arg3[%c0_8, %c128] : memref<128x512xf32, #tpu.memory_space<vmem>>, vector<128x128xf32>
    %cst_9 = arith.constant dense<0.000000e+00> : vector<128x128xf32>
    %10 = tpu.matmul %9, %8, %cst_9 {dimension_numbers = #tpu.dot_dimension_numbers<[1], [0], [0], [1], [0, 0, 1, 1], [], []>} : vector<128x128xf32>, vector<128x128xf32>, vector<128x128xf32> -> vector<128x128xf32>
    %c0_10 = arith.constant 0 : index
    %c256 = arith.constant 256 : index
    %11 = vector.load %arg3[%c0_10, %c256] : memref<128x512xf32, #tpu.memory_space<vmem>>, vector<128x128xf32>
    %cst_11 = arith.constant dense<0.000000e+00> : vector<128x128xf32>
    %12 = tpu.matmul %11, %1, %cst_11 {dimension_numbers = #tpu.dot_dimension_numbers<[1], [0], [0], [1], [0, 0, 1, 1], [], []>} : vector<128x128xf32>, vector<128x128xf32>, vector<128x128xf32> -> vector<128x128xf32>
    %13 = arith.addf %10, %12 : vector<128x128xf32>
    %c0_12 = arith.constant 0 : index
    %c1 = arith.constant 1 : index
    %14 = vector.load %arg4[%c0_12, %c1] : memref<128x3xf32, #tpu.memory_space<vmem>>, vector<128x1xf32>
    %15 = vector.broadcast %14 : vector<128x1xf32> to vector<128x128xf32>
    %16 = arith.addf %13, %15 : vector<128x128xf32>
    %cst_13 = arith.constant 0.000000e+00 : f32
    %17 = vector.broadcast %cst_13 : f32 to vector<128x128xf32>
    %18 = arith.maximumf %16, %17 : vector<128x128xf32>
    %c0_14 = arith.constant 0 : index
    %c384 = arith.constant 384 : index
    %19 = vector.load %arg3[%c0_14, %c384] : memref<128x512xf32, #tpu.memory_space<vmem>>, vector<128x1xf32>
    %20 = vector.broadcast %19 : vector<128x1xf32> to vector<128x128xf32>
    %21 = arith.mulf %18, %20 : vector<128x128xf32>
    %cst_15 = arith.constant dense<0.000000e+00> : vector<128xf32>
    %22 = vector.multi_reduction <add>, %21, %cst_15 [0] : vector<128x128xf32> to vector<128xf32>
    %23 = vector.shape_cast %22 : vector<128xf32> to vector<1x128xf32>
    %c0_16 = arith.constant 0 : index
    %c2 = arith.constant 2 : index
    %24 = vector.load %arg4[%c0_16, %c2] : memref<128x3xf32, #tpu.memory_space<vmem>>, vector<1x1xf32>
    %25 = vector.broadcast %24 : vector<1x1xf32> to vector<1x128xf32>
    %26 = arith.addf %23, %25 : vector<1x128xf32>
    %c0_17 = arith.constant 0 : index
    %c0_18 = arith.constant 0 : index
    %27 = vector.load %arg5[%c0_17, %c0_18] : memref<1x128xf32, #tpu.memory_space<vmem>>, vector<1x128xf32>
    tpu.vector_store %arg5[%c0_17, %c0_18], %26 {strides = array<i32>} : memref<1x128xf32, #tpu.memory_space<vmem>>, vector<1x128xf32>,
    return
  }
  func.func @transform_0(%arg0: i32) -> (i32, i32) {
    %c0_i32 = arith.constant 0 : i32
    %c0_i32_0 = arith.constant 0 : i32
    return %c0_i32, %arg0 : i32, i32
  }
  func.func @transform_1(%arg0: i32) -> (i32, i32) {
    %c0_i32 = arith.constant 0 : i32
    %c0_i32_0 = arith.constant 0 : i32
    return %c0_i32, %arg0 : i32, i32
  }
  func.func @transform_2(%arg0: i32) -> (i32, i32) {
    %c0_i32 = arith.constant 0 : i32
    %c0_i32_0 = arith.constant 0 : i32
    %c0_i32_1 = arith.constant 0 : i32
    return %c0_i32, %c0_i32_0 : i32, i32
  }
  func.func @transform_3(%arg0: i32) -> (i32, i32) {
    %c0_i32 = arith.constant 0 : i32
    %c0_i32_0 = arith.constant 0 : i32
    %c0_i32_1 = arith.constant 0 : i32
    return %c0_i32, %c0_i32_0 : i32, i32
  }
  func.func @transform_4(%arg0: i32) -> (i32, i32) {
    %c0_i32 = arith.constant 0 : i32
    %c0_i32_0 = arith.constant 0 : i32
    return %c0_i32, %arg0 : i32, i32
  }
}

</mosaic_0001>

<llo_original>
// kernel: fc_late_action_saq_forward.1
$region0: #{fc_late_action_saq_forward.1}
  #allocation0 [shape = 'u32[]', space=smem, size = 0x4, offset = 0x4, fixed_abs, tag = 'smem constant byte address 0x4 - core index']
  #allocation1 [shape = 'u32[72,128]{1,0:T(1,128)}', space=vmem, size = 0x9000, scoped, tag = 'internal scratch']
  %s0 = inlined_call_operand.vmem [shape: f32[128,384], index: 0, kind: input, shape index: {}]
  %s1 = inlined_call_operand.vmem [shape: f32[128,384], index: 1, kind: input, shape index: {}]
  %s2 = inlined_call_operand.vmem [shape: f32[128,512], index: 2, kind: input, shape index: {}]
  %s3 = inlined_call_operand.vmem [shape: f32[128,3], index: 3, kind: input, shape index: {}]
  %s4 = inlined_call_operand.vmem [shape: f32[1,384], index: 4, kind: output, shape index: {}]
  %s5 = sld [smem:[#allocation0]]
  $region125: #{fc_late_action_saq_forward.1} parent=0
    _
  %s7 = ssub.s32 1, %s5
  %s8 = scalar_select 0, %s7, %s5
  $region1: #{fc_late_action_saq_forward.1} parent=0
    #allocation2 [shape = 'u8[131072]{0}', space=vmem, size = 0x20000, scoped, tag = 'input window, operand 0']
    #allocation3 [shape = 'u8[131072]{0}', space=vmem, size = 0x20000, scoped, tag = 'input window, operand 1']
    loop: start=0, step=1, limit=5
    $region2: #{fc_late_action_saq_forward.1} parent=1 // loop_pre_header
      _
    $region3: #{fc_late_action_saq_forward.1} parent=1 // loop_header
      %s10 = sphi 0, %s14
      %p11 = scmp.ge.s32.totalorder %s10, 5
      %s20 = sphi 0, %s22
      %s23 = sphi 0, %s20
      %s24 = sphi 0, %s23
      %s40 = sphi 0, %s24
      %s46 = sphi 0, %s48
      %s49 = sphi 0, %s46
      %s50 = sphi 0, %s49
      %s66 = sphi 0, %s50
      %s70 = sphi 0, %s70
      %s72 = sphi 0, %s70
      %s73 = sphi 0, %s72
      %s87 = sphi 0, %s73
      %s91 = sphi 0, %s91
      %s93 = sphi 0, %s91
      %s94 = sphi 0, %s93
      %s108 = sphi 0, %s94
      %s114 = sphi 0, %s116
      %s117 = sphi 0, %s114
      %s118 = sphi 0, %s117
      %s134 = sphi 0, %s118
    $region4: #{fc_late_action_saq_forward.1} parent=1 // loop_header_branch
      %13 = sbr.rel (%p11) target = $region8
    $region5: #{fc_late_action_saq_forward.1} parent=1 // loop_body
      %s15 = ssub.s32 %s10, 1
      %s16 = ssub.s32 %s10, 2
      %s17 = sadd.s32 %s10, 1
      %s18 = ssub.s32 %s10, %s17
      %p19 = scmp.eq.s32.totalorder %s18, 0
      %s21 = sadd.s32 %s20, 1
      %s22 = scalar_select %p19, %s20, %s21
      %p25 = pneg %p19
      %p26 = scmp.eq.s32.totalorder %s10, 2
      %p27 = por %p25, %p26
      %p28 = scmp.ne.s32.totalorder %s20, %s23
      %p29 = scmp.eq.s32.totalorder %s10, 0
      %p30 = por %p28, %p29
      %p31 = scmp.ne.s32.totalorder %s20, %s23
      %p32 = scmp.eq.s32.totalorder %s15, 2
      %p33 = por %p31, %p32
      %p34 = scmp.ne.s32.totalorder %s23, %s24
      %p35 = scmp.eq.s32.totalorder %s15, 0
      %p36 = por %p34, %p35
      %p37 = scmp.ne.s32.totalorder %s23, %s24
      %p38 = scmp.eq.s32.totalorder %s16, 2
      %p39 = por %p37, %p38
      %p41 = scmp.ne.s32.totalorder %s24, %s40
      %p42 = scmp.eq.s32.totalorder %s16, 0
      %p43 = por %p41, %p42
      %s44 = ssub.s32 %s10, %s17
      %p45 = scmp.eq.s32.totalorder %s44, 0
      %s47 = sadd.s32 %s46, 1
      %s48 = scalar_select %p45, %s46, %s47
      %p51 = pneg %p45
      %p52 = scmp.eq.s32.totalorder %s10, 2
      %p53 = por %p51, %p52
      %p54 = scmp.ne.s32.totalorder %s46, %s49
      %p55 = scmp.eq.s32.totalorder %s10, 0
      %p56 = por %p54, %p55
      %p57 = scmp.ne.s32.totalorder %s46, %s49
      %p58 = scmp.eq.s32.totalorder %s15, 2
      %p59 = por %p57, %p58
      %p60 = scmp.ne.s32.totalorder %s49, %s50
      %p61 = scmp.eq.s32.totalorder %s15, 0
      %p62 = por %p60, %p61
      %p63 = scmp.ne.s32.totalorder %s49, %s50
      %p64 = scmp.eq.s32.totalorder %s16, 2
      %p65 = por %p63, %p64
      %p67 = scmp.ne.s32.totalorder %s50, %s66
      %p68 = scmp.eq.s32.totalorder %s16, 0
      %p69 = por %p67, %p68
      %s71 = sadd.s32 %s70, 1
      %p74 = scmp.eq.s32.totalorder %s10, 2
      %p75 = scmp.ne.s32.totalorder %s70, %s72
      %p76 = scmp.eq.s32.totalorder %s10, 0
      %p77 = por %p75, %p76
      %p78 = scmp.ne.s32.totalorder %s70, %s72
      %p79 = scmp.eq.s32.totalorder %s15, 2
      %p80 = por %p78, %p79
      %p81 = scmp.ne.s32.totalorder %s72, %s73
      %p82 = scmp.eq.s32.totalorder %s15, 0
      %p83 = por %p81, %p82
      %p84 = scmp.ne.s32.totalorder %s72, %s73
      %p85 = scmp.eq.s32.totalorder %s16, 2
      %p86 = por %p84, %p85
      %p88 = scmp.ne.s32.totalorder %s73, %s87
      %p89 = scmp.eq.s32.totalorder %s16, 0
      %p90 = por %p88, %p89
      %s92 = sadd.s32 %s91, 1
      %p95 = scmp.eq.s32.totalorder %s10, 2
      %p96 = scmp.ne.s32.totalorder %s91, %s93
      %p97 = scmp.eq.s32.totalorder %s10, 0
      %p98 = por %p96, %p97
      %p99 = scmp.ne.s32.totalorder %s91, %s93
      %p100 = scmp.eq.s32.totalorder %s15, 2
      %p101 = por %p99, %p100
      %p102 = scmp.ne.s32.totalorder %s93, %s94
      %p103 = scmp.eq.s32.totalorder %s15, 0
      %p104 = por %p102, %p103
      %p105 = scmp.ne.s32.totalorder %s93, %s94
      %p106 = scmp.eq.s32.totalorder %s16, 2
      %p107 = por %p105, %p106
      %p109 = scmp.ne.s32.totalorder %s94, %s108
      %p110 = scmp.eq.s32.totalorder %s16, 0
      %p111 = por %p109, %p110
      %s112 = ssub.s32 %s10, %s17
      %p113 = scmp.eq.s32.totalorder %s112, 0
      %s115 = sadd.s32 %s114, 1
      %s116 = scalar_select %p113, %s114, %s115
      %p119 = pneg %p113
      %p120 = scmp.eq.s32.totalorder %s10, 2
      %p121 = por %p119, %p120
      %p122 = scmp.ne.s32.totalorder %s114, %s117
      %p123 = scmp.eq.s32.totalorder %s10, 0
      %p124 = por %p122, %p123
      %p125 = scmp.ne.s32.totalorder %s114, %s117
      %p126 = scmp.eq.s32.totalorder %s15, 2
      %p127 = por %p125, %p126
      %p128 = scmp.ne.s32.totalorder %s117, %s118
      %p129 = scmp.eq.s32.totalorder %s15, 0
      %p130 = por %p128, %p129
      %p131 = scmp.ne.s32.totalorder %s117, %s118
      %p132 = scmp.eq.s32.totalorder %s16, 2
      %p133 = por %p131, %p132
      %p135 = scmp.ne.s32.totalorder %s118, %s134
      %p136 = scmp.eq.s32.totalorder %s16, 0
      %p137 = por %p135, %p136
      %p138 = scmp.le.s32.totalorder 1, %s10
      %p139 = scmp.lt.s32.totalorder %s10, 4
      %p140 = pnand %p138, %p139
      %p141 = pneg %p140
      // Predicated region
      $region9: #{fc_late_action_saq_forward.1} parent=5 // pred_check
        _
      $region10: #{fc_late_action_saq_forward.1} parent=5 // pred_check_branch
        %143 = sbr.rel (%p140) target = $region12
      $region11: #{fc_late_action_saq_forward.1} parent=5 // pred_region
        %s144 = ssub.s32 %s10, 1
        // Predicated region
        $region13: #{fc_late_action_saq_forward.1} parent=11 // pred_check
          %p145 = pneg %p83
        $region14: #{fc_late_action_saq_forward.1} parent=11 // pred_check_branch
          %147 = sbr.rel (%p145) target = $region16
        $region15: #{fc_late_action_saq_forward.1} parent=11 // pred_region
          _
        $region16: #{fc_late_action_saq_forward.1} parent=11 // pred_fallthru
          _
        // Predicated region
        $region17: #{fc_late_action_saq_forward.1} parent=11 // pred_check
          %p148 = pneg %p104
        $region18: #{fc_late_action_saq_forward.1} parent=11 // pred_check_branch
          %150 = sbr.rel (%p148) target = $region20
        $region19: #{fc_late_action_saq_forward.1} parent=11 // pred_region
          _
        $region20: #{fc_late_action_saq_forward.1} parent=11 // pred_fallthru
          _
      $region12: #{fc_late_action_saq_forward.1} parent=5 // pred_fallthru
        _
      %p151 = scmp.lt.s32.totalorder %s10, 3
      // Predicated region
      $region21: #{fc_late_action_saq_forward.1} parent=5 // pred_check
        %p152 = pneg %p151
      $region22: #{fc_late_action_saq_forward.1} parent=5 // pred_check_branch
        %154 = sbr.rel (%p152) target = $region24
      $region23: #{fc_late_action_saq_forward.1} parent=5 // pred_region
        // Predicated region
        $region25: #{fc_late_action_saq_forward.1} parent=23 // pred_check
          %p155 = pneg %p30
        $region26: #{fc_late_action_saq_forward.1} parent=23 // pred_check_branch
          %157 = sbr.rel (%p155) target = $region28
        $region27: #{fc_late_action_saq_forward.1} parent=23 // pred_region
          %s158 = sand.u32 %s20, 1
          %s159 = sand.u32 %s20, 1
          %s160 = smul.addr %s159, 128
          %s161 = scalar_lea.vmem [#allocation2], %s160
          %s162 = smul.addr %s10, 8
          %s163 = scalar_lea.vmem %s0, %s162
          // Predicated region
          $region29: #{fc_late_action_saq_forward.1} parent=27 // pred_check
            _
          $region30: #{fc_late_action_saq_forward.1} parent=27 // pred_check_branch
            %165 = sbr.rel (0) target = $region32
          $region31: #{fc_late_action_saq_forward.1} parent=27 // pred_region
            // Predicated region
            $region33: #{fc_late_action_saq_forward.1} parent=31 // pred_check
              _
            $region34: #{fc_late_action_saq_forward.1} parent=31 // pred_check_branch
              %167 = sbr.rel (0) target = $region36
            $region35: #{fc_late_action_saq_forward.1} parent=31 // pred_region
              // Predicated region
              $region48: #{fc_late_action_saq_forward.1} parent=35 // pred_check
                _
              $region49: #{fc_late_action_saq_forward.1} parent=35 // pred_check_branch
                %213 = sbr.rel (0) target = $region51
              $region50: #{fc_late_action_saq_forward.1} parent=35 // pred_region
                loop: start=0, step=1, limit=1
                $region52: #{fc_late_action_saq_forward.1} parent=50 // loop_pre_header
                  _
                $region53: #{fc_late_action_saq_forward.1} parent=50 // loop_header
                  %s215 = sphi 0, %s219
                  %p216 = scmp.ge.s32.totalorder %s215, 1
                  %s220 = sphi %s163, %s163
                  %s221 = sphi %s161, %s161
                $region54: #{fc_late_action_saq_forward.1} parent=50 // loop_header_branch
                  %218 = sbr.rel (%p216) target = $region58
                $region55: #{fc_late_action_saq_forward.1} parent=50 // loop_body
                  %v222 = vld [vmem:[%s220] sm:$0xff]
                  %223 = vst [vmem:[%s221] sm:$0xff] %v222
                  %v224 = vld [vmem:[%s220 + $0x18] sm:$0xff]
                  %225 = vst [vmem:[%s221 + $0x8] sm:$0xff] %v224
                  %v226 = vld [vmem:[%s220 + $0x30] sm:$0xff]
                  %227 = vst [vmem:[%s221 + $0x10] sm:$0xff] %v226
                  %v228 = vld [vmem:[%s220 + $0x48] sm:$0xff]
                  %229 = vst [vmem:[%s221 + $0x18] sm:$0xff] %v228
                  %v230 = vld [vmem:[%s220 + $0x60] sm:$0xff]
                  %231 = vst [vmem:[%s221 + $0x20] sm:$0xff] %v230
                  %v232 = vld [vmem:[%s220 + $0x78] sm:$0xff]
                  %233 = vst [vmem:[%s221 + $0x28] sm:$0xff] %v232
                  %v234 = vld [vmem:[%s220 + $0x90] sm:$0xff]
                  %235 = vst [vmem:[%s221 + $0x30] sm:$0xff] %v234
                  %v236 = vld [vmem:[%s220 + $0xa8] sm:$0xff]
                  %237 = vst [vmem:[%s221 + $0x38] sm:$0xff] %v236
                  %v238 = vld [vmem:[%s220 + $0xc0] sm:$0xff]
                  %239 = vst [vmem:[%s221 + $0x40] sm:$0xff] %v238
                  %v240 = vld [vmem:[%s220 + $0xd8] sm:$0xff]
                  %241 = vst [vmem:[%s221 + $0x48] sm:$0xff] %v240
                  %v242 = vld [vmem:[%s220 + $0xf0] sm:$0xff]
                  %243 = vst [vmem:[%s221 + $0x50] sm:$0xff] %v242
                  %v244 = vld [vmem:[%s220 + $0x108] sm:$0xff]
                  %245 = vst [vmem:[%s221 + $0x58] sm:$0xff] %v244
                  %v246 = vld [vmem:[%s220 + $0x120] sm:$0xff]
                  %247 = vst [vmem:[%s221 + $0x60] sm:$0xff] %v246
                  %v248 = vld [vmem:[%s220 + $0x138] sm:$0xff]
                  %249 = vst [vmem:[%s221 + $0x68] sm:$0xff] %v248
                  %v250 = vld [vmem:[%s220 + $0x150] sm:$0xff]
                  %251 = vst [vmem:[%s221 + $0x70] sm:$0xff] %v250
                  %v252 = vld [vmem:[%s220 + $0x168] sm:$0xff]
                  %253 = vst [vmem:[%s221 + $0x78] sm:$0xff] %v252
                $region56: #{fc_late_action_saq_forward.1} parent=50 // loop_footer
                  %s219 = sadd.s32 1, %s215
                $region57: #{fc_late_action_saq_forward.1} parent=50 // loop_footer_branch
                  %214 = sbr.rel target = $region53
                $region58: #{fc_late_action_saq_forward.1} parent=50 // loop_exit
                  _
              $region51: #{fc_late_action_saq_forward.1} parent=35 // pred_fallthru
                _
              // Predicated region
              $region59: #{fc_late_action_saq_forward.1} parent=35 // pred_check
                _
              $region60: #{fc_late_action_saq_forward.1} parent=35 // pred_check_branch
                %255 = sbr.rel target = $region62
              $region61: #{fc_late_action_saq_forward.1} parent=35 // pred_region
                _
              $region62: #{fc_late_action_saq_forward.1} parent=35 // pred_fallthru
                _
            $region36: #{fc_late_action_saq_forward.1} parent=31 // pred_fallthru
              _
            // Predicated region
            $region37: #{fc_late_action_saq_forward.1} parent=31 // pred_check
              _
            $region38: #{fc_late_action_saq_forward.1} parent=31 // pred_check_branch
              %169 = sbr.rel target = $region40
            $region39: #{fc_late_action_saq_forward.1} parent=31 // pred_region
              %s171 = ssub.s32 256, 1
              loop: start=0, step=1, limit=1
              $region41: #{fc_late_action_saq_forward.1} parent=39 // loop_pre_header
                _
              $region42: #{fc_late_action_saq_forward.1} parent=39 // loop_header
                %s173 = sphi 0, %s177
                %p174 = scmp.ge.s32.totalorder %s173, 1
                %s178 = sphi %s163, %s163
                %s179 = sphi %s161, %s161
              $region43: #{fc_late_action_saq_forward.1} parent=39 // loop_header_branch
                %176 = sbr.rel (%p174) target = $region47
              $region44: #{fc_late_action_saq_forward.1} parent=39 // loop_body
                %v180 = vld [vmem:[%s178] sm:%s171]
                %181 = vst [vmem:[%s179] sm:%s171] %v180
                %v182 = vld [vmem:[%s178 + $0x18] sm:%s171]
                %183 = vst [vmem:[%s179 + $0x8] sm:%s171] %v182
                %v184 = vld [vmem:[%s178 + $0x30] sm:%s171]
                %185 = vst [vmem:[%s179 + $0x10] sm:%s171] %v184
                %v186 = vld [vmem:[%s178 + $0x48] sm:%s171]
                %187 = vst [vmem:[%s179 + $0x18] sm:%s171] %v186
                %v188 = vld [vmem:[%s178 + $0x60] sm:%s171]
                %189 = vst [vmem:[%s179 + $0x20] sm:%s171] %v188
                %v190 = vld [vmem:[%s178 + $0x78] sm:%s171]
                %191 = vst [vmem:[%s179 + $0x28] sm:%s171] %v190
                %v192 = vld [vmem:[%s178 + $0x90] sm:%s171]
                %193 = vst [vmem:[%s179 + $0x30] sm:%s171] %v192
                %v194 = vld [vmem:[%s178 + $0xa8] sm:%s171]
                %195 = vst [vmem:[%s179 + $0x38] sm:%s171] %v194
                %v196 = vld [vmem:[%s178 + $0xc0] sm:%s171]
                %197 = vst [vmem:[%s179 + $0x40] sm:%s171] %v196
                %v198 = vld [vmem:[%s178 + $0xd8] sm:%s171]
                %199 = vst [vmem:[%s179 + $0x48] sm:%s171] %v198
                %v200 = vld [vmem:[%s178 + $0xf0] sm:%s171]
                %201 = vst [vmem:[%s179 + $0x50] sm:%s171] %v200
                %v202 = vld [vmem:[%s178 + $0x108] sm:%s171]
                %203 = vst [vmem:[%s179 + $0x58] sm:%s171] %v202
                %v204 = vld [vmem:[%s178 + $0x120] sm:%s171]
                %205 = vst [vmem:[%s179 + $0x60] sm:%s171] %v204
                %v206 = vld [vmem:[%s178 + $0x138] sm:%s171]
                %207 = vst [vmem:[%s179 + $0x68] sm:%s171] %v206
                %v208 = vld [vmem:[%s178 + $0x150] sm:%s171]
                %209 = vst [vmem:[%s179 + $0x70] sm:%s171] %v208
                %v210 = vld [vmem:[%s178 + $0x168] sm:%s171]
                %211 = vst [vmem:[%s179 + $0x78] sm:%s171] %v210
              $region45: #{fc_late_action_saq_forward.1} parent=39 // loop_footer
                %s177 = sadd.s32 1, %s173
              $region46: #{fc_late_action_saq_forward.1} parent=39 // loop_footer_branch
                %172 = sbr.rel target = $region42
              $region47: #{fc_late_action_saq_forward.1} parent=39 // loop_exit
                _
            $region40: #{fc_late_action_saq_forward.1} parent=31 // pred_fallthru
              _
          $region32: #{fc_late_action_saq_forward.1} parent=27 // pred_fallthru
            _
          %256 = vnop
        $region28: #{fc_late_action_saq_forward.1} parent=23 // pred_fallthru
          _
        // Predicated region
        $region63: #{fc_late_action_saq_forward.1} parent=23 // pred_check
          %p257 = pneg %p56
        $region64: #{fc_late_action_saq_forward.1} parent=23 // pred_check_branch
          %259 = sbr.rel (%p257) target = $region66
        $region65: #{fc_late_action_saq_forward.1} parent=23 // pred_region
          %s260 = sand.u32 %s46, 1
          %s261 = sand.u32 %s46, 1
          %s262 = smul.addr %s261, 128
          %s263 = scalar_lea.vmem [#allocation3], %s262
          %s264 = smul.addr %s10, 8
          %s265 = scalar_lea.vmem %s1, %s264
          // Predicated region
          $region67: #{fc_late_action_saq_forward.1} parent=65 // pred_check
            _
          $region68: #{fc_late_action_saq_forward.1} parent=65 // pred_check_branch
            %267 = sbr.rel (0) target = $region70
          $region69: #{fc_late_action_saq_forward.1} parent=65 // pred_region
            // Predicated region
            $region71: #{fc_late_action_saq_forward.1} parent=69 // pred_check
              _
            $region72: #{fc_late_action_saq_forward.1} parent=69 // pred_check_branch
              %269 = sbr.rel (0) target = $region74
            $region73: #{fc_late_action_saq_forward.1} parent=69 // pred_region
              // Predicated region
              $region86: #{fc_late_action_saq_forward.1} parent=73 // pred_check
                _
              $region87: #{fc_late_action_saq_forward.1} parent=73 // pred_check_branch
                %315 = sbr.rel (0) target = $region89
              $region88: #{fc_late_action_saq_forward.1} parent=73 // pred_region
                loop: start=0, step=1, limit=1
                $region90: #{fc_late_action_saq_forward.1} parent=88 // loop_pre_header
                  _
                $region91: #{fc_late_action_saq_forward.1} parent=88 // loop_header
                  %s317 = sphi 0, %s321
                  %p318 = scmp.ge.s32.totalorder %s317, 1
                  %s322 = sphi %s265, %s265
                  %s323 = sphi %s263, %s263
                $region92: #{fc_late_action_saq_forward.1} parent=88 // loop_header_branch
                  %320 = sbr.rel (%p318) target = $region96
                $region93: #{fc_late_action_saq_forward.1} parent=88 // loop_body
                  %v324 = vld [vmem:[%s322] sm:$0xff]
                  %325 = vst [vmem:[%s323] sm:$0xff] %v324
                  %v326 = vld [vmem:[%s322 + $0x18] sm:$0xff]
                  %327 = vst [vmem:[%s323 + $0x8] sm:$0xff] %v326
                  %v328 = vld [vmem:[%s322 + $0x30] sm:$0xff]
                  %329 = vst [vmem:[%s323 + $0x10] sm:$0xff] %v328
                  %v330 = vld [vmem:[%s322 + $0x48] sm:$0xff]
                  %331 = vst [vmem:[%s323 + $0x18] sm:$0xff] %v330
                  %v332 = vld [vmem:[%s322 + $0x60] sm:$0xff]
                  %333 = vst [vmem:[%s323 + $0x20] sm:$0xff] %v332
                  %v334 = vld [vmem:[%s322 + $0x78] sm:$0xff]
                  %335 = vst [vmem:[%s323 + $0x28] sm:$0xff] %v334
                  %v336 = vld [vmem:[%s322 + $0x90] sm:$0xff]
                  %337 = vst [vmem:[%s323 + $0x30] sm:$0xff] %v336
                  %v338 = vld [vmem:[%s322 + $0xa8] sm:$0xff]
                  %339 = vst [vmem:[%s323 + $0x38] sm:$0xff] %v338
                  %v340 = vld [vmem:[%s322 + $0xc0] sm:$0xff]
                  %341 = vst [vmem:[%s323 + $0x40] sm:$0xff] %v340
                  %v342 = vld [vmem:[%s322 + $0xd8] sm:$0xff]
                  %343 = vst [vmem:[%s323 + $0x48] sm:$0xff] %v342
                  %v344 = vld [vmem:[%s322 + $0xf0] sm:$0xff]
                  %345 = vst [vmem:[%s323 + $0x50] sm:$0xff] %v344
                  %v346 = vld [vmem:[%s322 + $0x108] sm:$0xff]
                  %347 = vst [vmem:[%s323 + $0x58] sm:$0xff] %v346
                  %v348 = vld [vmem:[%s322 + $0x120] sm:$0xff]
                  %349 = vst [vmem:[%s323 + $0x60] sm:$0xff] %v348
                  %v350 = vld [vmem:[%s322 + $0x138] sm:$0xff]
                  %351 = vst [vmem:[%s323 + $0x68] sm:$0xff] %v350
                  %v352 = vld [vmem:[%s322 + $0x150] sm:$0xff]
                  %353 = vst [vmem:[%s323 + $0x70] sm:$0xff] %v352
                  %v354 = vld [vmem:[%s322 + $0x168] sm:$0xff]
                  %355 = vst [vmem:[%s323 + $0x78] sm:$0xff] %v354
                $region94: #{fc_late_action_saq_forward.1} parent=88 // loop_footer
                  %s321 = sadd.s32 1, %s317
                $region95: #{fc_late_action_saq_forward.1} parent=88 // loop_footer_branch
                  %316 = sbr.rel target = $region91
                $region96: #{fc_late_action_saq_forward.1} parent=88 // loop_exit
                  _
              $region89: #{fc_late_action_saq_forward.1} parent=73 // pred_fallthru
                _
              // Predicated region
              $region97: #{fc_late_action_saq_forward.1} parent=73 // pred_check
                _
              $region98: #{fc_late_action_saq_forward.1} parent=73 // pred_check_branch
                %357 = sbr.rel target = $region100
              $region99: #{fc_late_action_saq_forward.1} parent=73 // pred_region
                _
              $region100: #{fc_late_action_saq_forward.1} parent=73 // pred_fallthru
                _
            $region74: #{fc_late_action_saq_forward.1} parent=69 // pred_fallthru
              _
            // Predicated region
            $region75: #{fc_late_action_saq_forward.1} parent=69 // pred_check
              _
            $region76: #{fc_late_action_saq_forward.1} parent=69 // pred_check_branch
              %271 = sbr.rel target = $region78
            $region77: #{fc_late_action_saq_forward.1} parent=69 // pred_region
              %s273 = ssub.s32 256, 1
              loop: start=0, step=1, limit=1
              $region79: #{fc_late_action_saq_forward.1} parent=77 // loop_pre_header
                _
              $region80: #{fc_late_action_saq_forward.1} parent=77 // loop_header
                %s275 = sphi 0, %s279
                %p276 = scmp.ge.s32.totalorder %s275, 1
                %s280 = sphi %s265, %s265
                %s281 = sphi %s263, %s263
              $region81: #{fc_late_action_saq_forward.1} parent=77 // loop_header_branch
                %278 = sbr.rel (%p276) target = $region85
              $region82: #{fc_late_action_saq_forward.1} parent=77 // loop_body
                %v282 = vld [vmem:[%s280] sm:%s273]
                %283 = vst [vmem:[%s281] sm:%s273] %v282
                %v284 = vld [vmem:[%s280 + $0x18] sm:%s273]
                %285 = vst [vmem:[%s281 + $0x8] sm:%s273] %v284
                %v286 = vld [vmem:[%s280 + $0x30] sm:%s273]
                %287 = vst [vmem:[%s281 + $0x10] sm:%s273] %v286
                %v288 = vld [vmem:[%s280 + $0x48] sm:%s273]
                %289 = vst [vmem:[%s281 + $0x18] sm:%s273] %v288
                %v290 = vld [vmem:[%s280 + $0x60] sm:%s273]
                %291 = vst [vmem:[%s281 + $0x20] sm:%s273] %v290
                %v292 = vld [vmem:[%s280 + $0x78] sm:%s273]
                %293 = vst [vmem:[%s281 + $0x28] sm:%s273] %v292
                %v294 = vld [vmem:[%s280 + $0x90] sm:%s273]
                %295 = vst [vmem:[%s281 + $0x30] sm:%s273] %v294
                %v296 = vld [vmem:[%s280 + $0xa8] sm:%s273]
                %297 = vst [vmem:[%s281 + $0x38] sm:%s273] %v296
                %v298 = vld [vmem:[%s280 + $0xc0] sm:%s273]
                %299 = vst [vmem:[%s281 + $0x40] sm:%s273] %v298
                %v300 = vld [vmem:[%s280 + $0xd8] sm:%s273]
                %301 = vst [vmem:[%s281 + $0x48] sm:%s273] %v300
                %v302 = vld [vmem:[%s280 + $0xf0] sm:%s273]
                %303 = vst [vmem:[%s281 + $0x50] sm:%s273] %v302
                %v304 = vld [vmem:[%s280 + $0x108] sm:%s273]
                %305 = vst [vmem:[%s281 + $0x58] sm:%s273] %v304
                %v306 = vld [vmem:[%s280 + $0x120] sm:%s273]
                %307 = vst [vmem:[%s281 + $0x60] sm:%s273] %v306
                %v308 = vld [vmem:[%s280 + $0x138] sm:%s273]
                %309 = vst [vmem:[%s281 + $0x68] sm:%s273] %v308
                %v310 = vld [vmem:[%s280 + $0x150] sm:%s273]
                %311 = vst [vmem:[%s281 + $0x70] sm:%s273] %v310
                %v312 = vld [vmem:[%s280 + $0x168] sm:%s273]
                %313 = vst [vmem:[%s281 + $0x78] sm:%s273] %v312
              $region83: #{fc_late_action_saq_forward.1} parent=77 // loop_footer
                %s279 = sadd.s32 1, %s275
              $region84: #{fc_late_action_saq_forward.1} parent=77 // loop_footer_branch
                %274 = sbr.rel target = $region80
              $region85: #{fc_late_action_saq_forward.1} parent=77 // loop_exit
                _
            $region78: #{fc_late_action_saq_forward.1} parent=69 // pred_fallthru
              _
          $region70: #{fc_late_action_saq_forward.1} parent=65 // pred_fallthru
            _
          %358 = vnop
        $region66: #{fc_late_action_saq_forward.1} parent=23 // pred_fallthru
          _
      $region24: #{fc_late_action_saq_forward.1} parent=5 // pred_fallthru
        _
      %p359 = scmp.le.s32.totalorder 1, %s10
      %p360 = scmp.lt.s32.totalorder %s10, 4
      %p361 = pnand %p359, %p360
      %p362 = pneg %p361
      // Predicated region
      $region101: #{fc_late_action_saq_forward.1} parent=5 // pred_check
        _
      $region102: #{fc_late_action_saq_forward.1} parent=5 // pred_check_branch
        %364 = sbr.rel (%p361) target = $region104
      $region103: #{fc_late_action_saq_forward.1} parent=5 // pred_region
        %s365 = ssub.s32 %s10, 1
        %s366 = sand.u32 %s23, 1
        %s367 = sand.u32 %s23, 1
        %s368 = smul.addr %s367, 128
        %s369 = scalar_lea.vmem [#allocation2], %s368
        // Predicated region
        $region105: #{fc_late_action_saq_forward.1} parent=103 // pred_check
          %p370 = pneg %p36
        $region106: #{fc_late_action_saq_forward.1} parent=103 // pred_check_branch
          %372 = sbr.rel (%p370) target = $region108
        $region107: #{fc_late_action_saq_forward.1} parent=103 // pred_region
          _
        $region108: #{fc_late_action_saq_forward.1} parent=103 // pred_fallthru
          _
        %s373 = sand.u32 %s49, 1
        %s374 = sand.u32 %s49, 1
        %s375 = smul.addr %s374, 128
        %s376 = scalar_lea.vmem [#allocation3], %s375
        // Predicated region
        $region109: #{fc_late_action_saq_forward.1} parent=103 // pred_check
          %p377 = pneg %p62
        $region110: #{fc_late_action_saq_forward.1} parent=103 // pred_check_branch
          %379 = sbr.rel (%p377) target = $region112
        $region111: #{fc_late_action_saq_forward.1} parent=103 // pred_region
          _
        $region112: #{fc_late_action_saq_forward.1} parent=103 // pred_fallthru
          _
        %s380 = sand.u32 %s23, 1
        %s381 = sand.u32 %s23, 1
        %s382 = smul.addr %s381, 128
        %s383 = scalar_lea.vmem [#allocation2], %s382
        %p384 = pneg %p36
        %p385 = pneg %p33
        %s386 = sand.u32 %s49, 1
        %s387 = sand.u32 %s49, 1
        %s388 = smul.addr %s387, 128
        %s389 = scalar_lea.vmem [#allocation3], %s388
        %p390 = pneg %p62
        %p391 = pneg %p59
        %p392 = pneg %p83
        %p393 = pneg %p80
        %p394 = pneg %p104
        %p395 = pneg %p101
        %p396 = pneg %p130
        %p397 = pneg %p127
        %p398 = scmp.lt.s32.totalorder %s15, 2
        %s399 = scalar_select %p398, %s15, 2
        %s400 = scalar_lea.vmem %s4, %s399
        %p401 = scmp.lt.s32.totalorder %s15, 2
        %s402 = scalar_select %p401, %s15, 2
        %s403 = scalar_lea.vmem %s4, %s402
        %v404 = vld [vmem:[%s369] sm:$0xff]
        %v405 = vld [vmem:[%s369 + $0x8] sm:$0xff]
        %v406 = vld [vmem:[%s369 + $0x10] sm:$0xff]
        %v407 = vld [vmem:[%s369 + $0x18] sm:$0xff]
        %v408 = vld [vmem:[%s369 + $0x20] sm:$0xff]
        %v409 = vld [vmem:[%s369 + $0x28] sm:$0xff]
        %v410 = vld [vmem:[%s369 + $0x30] sm:$0xff]
        %v411 = vld [vmem:[%s369 + $0x38] sm:$0xff]
        %v412 = vld [vmem:[%s369 + $0x40] sm:$0xff]
        %v413 = vld [vmem:[%s369 + $0x48] sm:$0xff]
        %v414 = vld [vmem:[%s369 + $0x50] sm:$0xff]
        %v415 = vld [vmem:[%s369 + $0x58] sm:$0xff]
        %v416 = vld [vmem:[%s369 + $0x60] sm:$0xff]
        %v417 = vld [vmem:[%s369 + $0x68] sm:$0xff]
        %v418 = vld [vmem:[%s369 + $0x70] sm:$0xff]
        %v419 = vld [vmem:[%s369 + $0x78] sm:$0xff]
        %v420 = vld [vmem:[%s376] sm:$0xff]
        %v421 = vld [vmem:[%s376 + $0x8] sm:$0xff]
        %v422 = vld [vmem:[%s376 + $0x10] sm:$0xff]
        %v423 = vld [vmem:[%s376 + $0x18] sm:$0xff]
        %v424 = vld [vmem:[%s376 + $0x20] sm:$0xff]
        %v425 = vld [vmem:[%s376 + $0x28] sm:$0xff]
        %v426 = vld [vmem:[%s376 + $0x30] sm:$0xff]
        %v427 = vld [vmem:[%s376 + $0x38] sm:$0xff]
        %v428 = vld [vmem:[%s376 + $0x40] sm:$0xff]
        %v429 = vld [vmem:[%s376 + $0x48] sm:$0xff]
        %v430 = vld [vmem:[%s376 + $0x50] sm:$0xff]
        %v431 = vld [vmem:[%s376 + $0x58] sm:$0xff]
        %v432 = vld [vmem:[%s376 + $0x60] sm:$0xff]
        %v433 = vld [vmem:[%s376 + $0x68] sm:$0xff]
        %v434 = vld [vmem:[%s376 + $0x70] sm:$0xff]
        %v435 = vld [vmem:[%s376 + $0x78] sm:$0xff]
        %v436 = vld [vmem:[%s2] sm:$0xff]
        %v437 = vld [vmem:[%s2 + $0x20] sm:$0xff]
        %v438 = vld [vmem:[%s2 + $0x40] sm:$0xff]
        %v439 = vld [vmem:[%s2 + $0x60] sm:$0xff]
        %v440 = vld [vmem:[%s2 + $0x80] sm:$0xff]
        %v441 = vld [vmem:[%s2 + $0xa0] sm:$0xff]
        %v442 = vld [vmem:[%s2 + $0xc0] sm:$0xff]
        %v443 = vld [vmem:[%s2 + $0xe0] sm:$0xff]
        %v444 = vld [vmem:[%s2 + $0x100] sm:$0xff]
        %v445 = vld [vmem:[%s2 + $0x120] sm:$0xff]
        %v446 = vld [vmem:[%s2 + $0x140] sm:$0xff]
        %v447 = vld [vmem:[%s2 + $0x160] sm:$0xff]
        %v448 = vld [vmem:[%s2 + $0x180] sm:$0xff]
        %v449 = vld [vmem:[%s2 + $0x1a0] sm:$0xff]
        %v450 = vld [vmem:[%s2 + $0x1c0] sm:$0xff]
        %v451 = vld [vmem:[%s2 + $0x1e0] sm:$0xff]
        %v452 = vld [vmem:[%s3] sm:$0xff]
        %v453 = vld [vmem:[%s3 + $0x8] sm:$0xff]
        %v454 = vld [vmem:[%s3 + $0x10] sm:$0xff]
        %v455 = vld [vmem:[%s3 + $0x18] sm:$0xff]
        %v456 = vld [vmem:[%s3 + $0x20] sm:$0xff]
        %v457 = vld [vmem:[%s3 + $0x28] sm:$0xff]
        %v458 = vld [vmem:[%s3 + $0x30] sm:$0xff]
        %v459 = vld [vmem:[%s3 + $0x38] sm:$0xff]
        %v460 = vld [vmem:[%s3 + $0x40] sm:$0xff]
        %v461 = vld [vmem:[%s3 + $0x48] sm:$0xff]
        %v462 = vld [vmem:[%s3 + $0x50] sm:$0xff]
        %v463 = vld [vmem:[%s3 + $0x58] sm:$0xff]
        %v464 = vld [vmem:[%s3 + $0x60] sm:$0xff]
        %v465 = vld [vmem:[%s3 + $0x68] sm:$0xff]
        %v466 = vld [vmem:[%s3 + $0x70] sm:$0xff]
        %v467 = vld [vmem:[%s3 + $0x78] sm:$0xff]
        %469 = vset.pattern.permute.xlu0 0
        %470 = vperm.xlu0 %469, %v452
        %v471 = vpop.permute.xlu0 %470
        %474 = vset.pattern.permute.xlu0 0
        %475 = vperm.xlu0 %474, %v453
        %v476 = vpop.permute.xlu0 %475
        %479 = vset.pattern.permute.xlu0 0
        %480 = vperm.xlu0 %479, %v454
        %v481 = vpop.permute.xlu0 %480
        %484 = vset.pattern.permute.xlu0 0
        %485 = vperm.xlu0 %484, %v455
        %v486 = vpop.permute.xlu0 %485
        %489 = vset.pattern.permute.xlu0 0
        %490 = vperm.xlu0 %489, %v456
        %v491 = vpop.permute.xlu0 %490
        %494 = vset.pattern.permute.xlu0 0
        %495 = vperm.xlu0 %494, %v457
        %v496 = vpop.permute.xlu0 %495
        %499 = vset.pattern.permute.xlu0 0
        %500 = vperm.xlu0 %499, %v458
        %v501 = vpop.permute.xlu0 %500
        %504 = vset.pattern.permute.xlu0 0
        %505 = vperm.xlu0 %504, %v459
        %v506 = vpop.permute.xlu0 %505
        %509 = vset.pattern.permute.xlu0 0
        %510 = vperm.xlu0 %509, %v460
        %v511 = vpop.permute.xlu0 %510
        %514 = vset.pattern.permute.xlu0 0
        %515 = vperm.xlu0 %514, %v461
        %v516 = vpop.permute.xlu0 %515
        %519 = vset.pattern.permute.xlu0 0
        %520 = vperm.xlu0 %519, %v462
        %v521 = vpop.permute.xlu0 %520
        %524 = vset.pattern.permute.xlu0 0
        %525 = vperm.xlu0 %524, %v463
        %v526 = vpop.permute.xlu0 %525
        %529 = vset.pattern.permute.xlu0 0
        %530 = vperm.xlu0 %529, %v464
        %v531 = vpop.permute.xlu0 %530
        %534 = vset.pattern.permute.xlu0 0
        %535 = vperm.xlu0 %534, %v465
        %v536 = vpop.permute.xlu0 %535
        %539 = vset.pattern.permute.xlu0 0
        %540 = vperm.xlu0 %539, %v466
        %v541 = vpop.permute.xlu0 %540
        %544 = vset.pattern.permute.xlu0 0
        %545 = vperm.xlu0 %544, %v467
        %v546 = vpop.permute.xlu0 %545
        %548 = vmatpush.msra.mxu0 %v419
        %549 = vmatpush.msra.mxu0 %v418
        %550 = vmatpush.msra.mxu0 %v417
        %551 = vmatpush.msra.mxu0 %v416
        %552 = vmatpush.msra.mxu0 %v415
        %553 = vmatpush.msra.mxu0 %v414
        %554 = vmatpush.msra.mxu0 %v413
        %555 = vmatpush.msra.mxu0 %v412
        %556 = vmatpush.msra.mxu0 %v411
        %557 = vmatpush.msra.mxu0 %v410
        %558 = vmatpush.msra.mxu0 %v409
        %559 = vmatpush.msra.mxu0 %v408
        %560 = vmatpush.msra.mxu0 %v407
        %561 = vmatpush.msra.mxu0 %v406
        %562 = vmatpush.msra.mxu0 %v405
        %563 = vmatpush.msra.mxu0 %v404
        %564 = vmatmul.f32.gmra.mxu0 %v436
        %v565 = vpop.f32.mrf.mxu0
        %v566 = vadd.f32 %v471, %v565
        %567 = vmatmul.f32.gmra.mxu0 %v437
        %v568 = vpop.f32.mrf.mxu0
        %v569 = vadd.f32 %v476, %v568
        %570 = vmatmul.f32.gmra.mxu0 %v438
        %v571 = vpop.f32.mrf.mxu0
        %v572 = vadd.f32 %v481, %v571
        %573 = vmatmul.f32.gmra.mxu0 %v439
        %v574 = vpop.f32.mrf.mxu0
        %v575 = vadd.f32 %v486, %v574
        %576 = vmatmul.f32.gmra.mxu0 %v440
        %v577 = vpop.f32.mrf.mxu0
        %v578 = vadd.f32 %v491, %v577
        %579 = vmatmul.f32.gmra.mxu0 %v441
        %v580 = vpop.f32.mrf.mxu0
        %v581 = vadd.f32 %v496, %v580
        %582 = vmatmul.f32.gmra.mxu0 %v442
        %v583 = vpop.f32.mrf.mxu0
        %v584 = vadd.f32 %v501, %v583
        %585 = vmatmul.f32.gmra.mxu0 %v443
        %v586 = vpop.f32.mrf.mxu0
        %v587 = vadd.f32 %v506, %v586
        %588 = vmatmul.f32.gmra.mxu0 %v444
        %v589 = vpop.f32.mrf.mxu0
        %v590 = vadd.f32 %v511, %v589
        %591 = vmatmul.f32.gmra.mxu0 %v445
        %v592 = vpop.f32.mrf.mxu0
        %v593 = vadd.f32 %v516, %v592
        %594 = vmatmul.f32.gmra.mxu0 %v446
        %v595 = vpop.f32.mrf.mxu0
        %v596 = vadd.f32 %v521, %v595
        %597 = vmatmul.f32.gmra.mxu0 %v447
        %v598 = vpop.f32.mrf.mxu0
        %v599 = vadd.f32 %v526, %v598
        %600 = vmatmul.f32.gmra.mxu0 %v448
        %v601 = vpop.f32.mrf.mxu0
        %v602 = vadd.f32 %v531, %v601
        %603 = vmatmul.f32.gmra.mxu0 %v449
        %v604 = vpop.f32.mrf.mxu0
        %v605 = vadd.f32 %v536, %v604
        %606 = vmatmul.f32.gmra.mxu0 %v450
        %v607 = vpop.f32.mrf.mxu0
        %v608 = vadd.f32 %v541, %v607
        %609 = vmatmul.f32.gmra.mxu0 %v451
        %v610 = vpop.f32.mrf.mxu0
        %v611 = vadd.f32 %v546, %v610
        %612 = vdwg.mxu0
        %v613 = vmax.f32 %v566, 0.0
        %v614 = vmax.f32 %v569, 0.0
        %v615 = vmax.f32 %v572, 0.0
        %v616 = vmax.f32 %v575, 0.0
        %v617 = vmax.f32 %v578, 0.0
        %v618 = vmax.f32 %v581, 0.0
        %v619 = vmax.f32 %v584, 0.0
        %v620 = vmax.f32 %v587, 0.0
        %v621 = vmax.f32 %v590, 0.0
        %v622 = vmax.f32 %v593, 0.0
        %v623 = vmax.f32 %v596, 0.0
        %v624 = vmax.f32 %v599, 0.0
        %v625 = vmax.f32 %v602, 0.0
        %v626 = vmax.f32 %v605, 0.0
        %v627 = vmax.f32 %v608, 0.0
        %v628 = vmax.f32 %v611, 0.0
        %v629 = vld [vmem:[%s2 + $0x8] sm:$0xff]
        %v630 = vld [vmem:[%s2 + $0x28] sm:$0xff]
        %v631 = vld [vmem:[%s2 + $0x48] sm:$0xff]
        %v632 = vld [vmem:[%s2 + $0x68] sm:$0xff]
        %v633 = vld [vmem:[%s2 + $0x88] sm:$0xff]
        %v634 = vld [vmem:[%s2 + $0xa8] sm:$0xff]
        %v635 = vld [vmem:[%s2 + $0xc8] sm:$0xff]
        %v636 = vld [vmem:[%s2 + $0xe8] sm:$0xff]
        %v637 = vld [vmem:[%s2 + $0x108] sm:$0xff]
        %v638 = vld [vmem:[%s2 + $0x128] sm:$0xff]
        %v639 = vld [vmem:[%s2 + $0x148] sm:$0xff]
        %v640 = vld [vmem:[%s2 + $0x168] sm:$0xff]
        %v641 = vld [vmem:[%s2 + $0x188] sm:$0xff]
        %v642 = vld [vmem:[%s2 + $0x1a8] sm:$0xff]
        %v643 = vld [vmem:[%s2 + $0x1c8] sm:$0xff]
        %v644 = vld [vmem:[%s2 + $0x1e8] sm:$0xff]
        %v645 = vld [vmem:[%s2 + $0x10] sm:$0xff]
        %v646 = vld [vmem:[%s2 + $0x30] sm:$0xff]
        %v647 = vld [vmem:[%s2 + $0x50] sm:$0xff]
        %v648 = vld [vmem:[%s2 + $0x70] sm:$0xff]
        %v649 = vld [vmem:[%s2 + $0x90] sm:$0xff]
        %v650 = vld [vmem:[%s2 + $0xb0] sm:$0xff]
        %v651 = vld [vmem:[%s2 + $0xd0] sm:$0xff]
        %v652 = vld [vmem:[%s2 + $0xf0] sm:$0xff]
        %v653 = vld [vmem:[%s2 + $0x110] sm:$0xff]
        %v654 = vld [vmem:[%s2 + $0x130] sm:$0xff]
        %v655 = vld [vmem:[%s2 + $0x150] sm:$0xff]
        %v656 = vld [vmem:[%s2 + $0x170] sm:$0xff]
        %v657 = vld [vmem:[%s2 + $0x190] sm:$0xff]
        %v658 = vld [vmem:[%s2 + $0x1b0] sm:$0xff]
        %v659 = vld [vmem:[%s2 + $0x1d0] sm:$0xff]
        %v660 = vld [vmem:[%s2 + $0x1f0] sm:$0xff]
        %661 = vmatpush.msra.mxu0 %v435
        %662 = vmatpush.msra.mxu0 %v434
        %663 = vmatpush.msra.mxu0 %v433
        %664 = vmatpush.msra.mxu0 %v432
        %665 = vmatpush.msra.mxu0 %v431
        %666 = vmatpush.msra.mxu0 %v430
        %667 = vmatpush.msra.mxu0 %v429
        %668 = vmatpush.msra.mxu0 %v428
        %669 = vmatpush.msra.mxu0 %v427
        %670 = vmatpush.msra.mxu0 %v426
        %671 = vmatpush.msra.mxu0 %v425
        %672 = vmatpush.msra.mxu0 %v424
        %673 = vmatpush.msra.mxu0 %v423
        %674 = vmatpush.msra.mxu0 %v422
        %675 = vmatpush.msra.mxu0 %v421
        %676 = vmatpush.msra.mxu0 %v420
        %677 = vmatmul.f32.gmra.mxu0 %v645
        %v678 = vpop.f32.mrf.mxu0
        %v679 = vadd.f32 0.0, %v678
        %680 = vmatmul.f32.gmra.mxu0 %v646
        %v681 = vpop.f32.mrf.mxu0
        %v682 = vadd.f32 0.0, %v681
        %683 = vmatmul.f32.gmra.mxu0 %v647
        %v684 = vpop.f32.mrf.mxu0
        %v685 = vadd.f32 0.0, %v684
        %686 = vmatmul.f32.gmra.mxu0 %v648
        %v687 = vpop.f32.mrf.mxu0
        %v688 = vadd.f32 0.0, %v687
        %689 = vmatmul.f32.gmra.mxu0 %v649
        %v690 = vpop.f32.mrf.mxu0
        %v691 = vadd.f32 0.0, %v690
        %692 = vmatmul.f32.gmra.mxu0 %v650
        %v693 = vpop.f32.mrf.mxu0
        %v694 = vadd.f32 0.0, %v693
        %695 = vmatmul.f32.gmra.mxu0 %v651
        %v696 = vpop.f32.mrf.mxu0
        %v697 = vadd.f32 0.0, %v696
        %698 = vmatmul.f32.gmra.mxu0 %v652
        %v699 = vpop.f32.mrf.mxu0
        %v700 = vadd.f32 0.0, %v699
        %701 = vmatmul.f32.gmra.mxu0 %v653
        %v702 = vpop.f32.mrf.mxu0
        %v703 = vadd.f32 0.0, %v702
        %704 = vmatmul.f32.gmra.mxu0 %v654
        %v705 = vpop.f32.mrf.mxu0
        %v706 = vadd.f32 0.0, %v705
        %707 = vmatmul.f32.gmra.mxu0 %v655
        %v708 = vpop.f32.mrf.mxu0
        %v709 = vadd.f32 0.0, %v708
        %710 = vmatmul.f32.gmra.mxu0 %v656
        %v711 = vpop.f32.mrf.mxu0
        %v712 = vadd.f32 0.0, %v711
        %713 = vmatmul.f32.gmra.mxu0 %v657
        %v714 = vpop.f32.mrf.mxu0
        %v715 = vadd.f32 0.0, %v714
        %716 = vmatmul.f32.gmra.mxu0 %v658
        %v717 = vpop.f32.mrf.mxu0
        %v718 = vadd.f32 0.0, %v717
        %719 = vmatmul.f32.gmra.mxu0 %v659
        %v720 = vpop.f32.mrf.mxu0
        %v721 = vadd.f32 0.0, %v720
        %722 = vmatmul.f32.gmra.mxu0 %v660
        %v723 = vpop.f32.mrf.mxu0
        %v724 = vadd.f32 0.0, %v723
        %725 = vdwg.mxu0
        %726 = vmatpush.msra.mxu0 %v628
        %727 = vmatpush.msra.mxu0 %v627
        %728 = vmatpush.msra.mxu0 %v626
        %729 = vmatpush.msra.mxu0 %v625
        %730 = vmatpush.msra.mxu0 %v624
        %731 = vmatpush.msra.mxu0 %v623
        %732 = vmatpush.msra.mxu0 %v622
        %733 = vmatpush.msra.mxu0 %v621
        %734 = vmatpush.msra.mxu0 %v620
        %735 = vmatpush.msra.mxu0 %v619
        %736 = vmatpush.msra.mxu0 %v618
        %737 = vmatpush.msra.mxu0 %v617
        %738 = vmatpush.msra.mxu0 %v616
        %739 = vmatpush.msra.mxu0 %v615
        %740 = vmatpush.msra.mxu0 %v614
        %741 = vmatpush.msra.mxu0 %v613
        %742 = vmatmul.f32.gmra.mxu0 %v629
        %v743 = vpop.f32.mrf.mxu0
        %v744 = vadd.f32 %v679, %v743
        %745 = vmatmul.f32.gmra.mxu0 %v630
        %v746 = vpop.f32.mrf.mxu0
        %v747 = vadd.f32 %v682, %v746
        %748 = vmatmul.f32.gmra.mxu0 %v631
        %v749 = vpop.f32.mrf.mxu0
        %v750 = vadd.f32 %v685, %v749
        %751 = vmatmul.f32.gmra.mxu0 %v632
        %v752 = vpop.f32.mrf.mxu0
        %v753 = vadd.f32 %v688, %v752
        %754 = vmatmul.f32.gmra.mxu0 %v633
        %v755 = vpop.f32.mrf.mxu0
        %v756 = vadd.f32 %v691, %v755
        %757 = vmatmul.f32.gmra.mxu0 %v634
        %v758 = vpop.f32.mrf.mxu0
        %v759 = vadd.f32 %v694, %v758
        %760 = vmatmul.f32.gmra.mxu0 %v635
        %v761 = vpop.f32.mrf.mxu0
        %v762 = vadd.f32 %v697, %v761
        %763 = vmatmul.f32.gmra.mxu0 %v636
        %v764 = vpop.f32.mrf.mxu0
        %v765 = vadd.f32 %v700, %v764
        %766 = vmatmul.f32.gmra.mxu0 %v637
        %v767 = vpop.f32.mrf.mxu0
        %v768 = vadd.f32 %v703, %v767
        %769 = vmatmul.f32.gmra.mxu0 %v638
        %v770 = vpop.f32.mrf.mxu0
        %v771 = vadd.f32 %v706, %v770
        %772 = vmatmul.f32.gmra.mxu0 %v639
        %v773 = vpop.f32.mrf.mxu0
        %v774 = vadd.f32 %v709, %v773
        %775 = vmatmul.f32.gmra.mxu0 %v640
        %v776 = vpop.f32.mrf.mxu0
        %v777 = vadd.f32 %v712, %v776
        %778 = vmatmul.f32.gmra.mxu0 %v641
        %v779 = vpop.f32.mrf.mxu0
        %v780 = vadd.f32 %v715, %v779
        %781 = vmatmul.f32.gmra.mxu0 %v642
        %v782 = vpop.f32.mrf.mxu0
        %v783 = vadd.f32 %v718, %v782
        %784 = vmatmul.f32.gmra.mxu0 %v643
        %v785 = vpop.f32.mrf.mxu0
        %v786 = vadd.f32 %v721, %v785
        %787 = vmatmul.f32.gmra.mxu0 %v644
        %v788 = vpop.f32.mrf.mxu0
        %v789 = vadd.f32 %v724, %v788
        %790 = vdwg.mxu0
        %791 = vset.pattern.permute.xlu0 1
        %792 = vperm.xlu0 %791, %v452
        %v793 = vpop.permute.xlu0 %792
        %795 = vset.pattern.permute.xlu0 1
        %796 = vperm.xlu0 %795, %v453
        %v797 = vpop.permute.xlu0 %796
        %799 = vset.pattern.permute.xlu0 1
        %800 = vperm.xlu0 %799, %v454
        %v801 = vpop.permute.xlu0 %800
        %803 = vset.pattern.permute.xlu0 1
        %804 = vperm.xlu0 %803, %v455
        %v805 = vpop.permute.xlu0 %804
        %807 = vset.pattern.permute.xlu0 1
        %808 = vperm.xlu0 %807, %v456
        %v809 = vpop.permute.xlu0 %808
        %811 = vset.pattern.permute.xlu0 1
        %812 = vperm.xlu0 %811, %v457
        %v813 = vpop.permute.xlu0 %812
        %815 = vset.pattern.permute.xlu0 1
        %816 = vperm.xlu0 %815, %v458
        %v817 = vpop.permute.xlu0 %816
        %819 = vset.pattern.permute.xlu0 1
        %820 = vperm.xlu0 %819, %v459
        %v821 = vpop.permute.xlu0 %820
        %823 = vset.pattern.permute.xlu0 1
        %824 = vperm.xlu0 %823, %v460
        %v825 = vpop.permute.xlu0 %824
        %827 = vset.pattern.permute.xlu0 1
        %828 = vperm.xlu0 %827, %v461
        %v829 = vpop.permute.xlu0 %828
        %831 = vset.pattern.permute.xlu0 1
        %832 = vperm.xlu0 %831, %v462
        %v833 = vpop.permute.xlu0 %832
        %835 = vset.pattern.permute.xlu0 1
        %836 = vperm.xlu0 %835, %v463
        %v837 = vpop.permute.xlu0 %836
        %839 = vset.pattern.permute.xlu0 1
        %840 = vperm.xlu0 %839, %v464
        %v841 = vpop.permute.xlu0 %840
        %843 = vset.pattern.permute.xlu0 1
        %844 = vperm.xlu0 %843, %v465
        %v845 = vpop.permute.xlu0 %844
        %847 = vset.pattern.permute.xlu0 1
        %848 = vperm.xlu0 %847, %v466
        %v849 = vpop.permute.xlu0 %848
        %851 = vset.pattern.permute.xlu0 1
        %852 = vperm.xlu0 %851, %v467
        %v853 = vpop.permute.xlu0 %852
        %v855 = vadd.f32 %v744, %v793
        %v856 = vadd.f32 %v747, %v797
        %v857 = vadd.f32 %v750, %v801
        %v858 = vadd.f32 %v753, %v805
        %v859 = vadd.f32 %v756, %v809
        %v860 = vadd.f32 %v759, %v813
        %v861 = vadd.f32 %v762, %v817
        %v862 = vadd.f32 %v765, %v821
        %v863 = vadd.f32 %v768, %v825
        %v864 = vadd.f32 %v771, %v829
        %v865 = vadd.f32 %v774, %v833
        %v866 = vadd.f32 %v777, %v837
        %v867 = vadd.f32 %v780, %v841
        %v868 = vadd.f32 %v783, %v845
        %v869 = vadd.f32 %v786, %v849
        %v870 = vadd.f32 %v789, %v853
        %v871 = vmax.f32 %v855, 0.0
        %v872 = vmax.f32 %v856, 0.0
        %v873 = vmax.f32 %v857, 0.0
        %v874 = vmax.f32 %v858, 0.0
        %v875 = vmax.f32 %v859, 0.0
        %v876 = vmax.f32 %v860, 0.0
        %v877 = vmax.f32 %v861, 0.0
        %v878 = vmax.f32 %v862, 0.0
        %v879 = vmax.f32 %v863, 0.0
        %v880 = vmax.f32 %v864, 0.0
        %v881 = vmax.f32 %v865, 0.0
        %v882 = vmax.f32 %v866, 0.0
        %v883 = vmax.f32 %v867, 0.0
        %v884 = vmax.f32 %v868, 0.0
        %v885 = vmax.f32 %v869, 0.0
        %v886 = vmax.f32 %v870, 0.0
        %v887 = vld [vmem:[%s2 + $0x18] sm:$0xff]
        %v888 = vld [vmem:[%s2 + $0x38] sm:$0xff]
        %v889 = vld [vmem:[%s2 + $0x58] sm:$0xff]
        %v890 = vld [vmem:[%s2 + $0x78] sm:$0xff]
        %v891 = vld [vmem:[%s2 + $0x98] sm:$0xff]
        %v892 = vld [vmem:[%s2 + $0xb8] sm:$0xff]
        %v893 = vld [vmem:[%s2 + $0xd8] sm:$0xff]
        %v894 = vld [vmem:[%s2 + $0xf8] sm:$0xff]
        %v895 = vld [vmem:[%s2 + $0x118] sm:$0xff]
        %v896 = vld [vmem:[%s2 + $0x138] sm:$0xff]
        %v897 = vld [vmem:[%s2 + $0x158] sm:$0xff]
        %v898 = vld [vmem:[%s2 + $0x178] sm:$0xff]
        %v899 = vld [vmem:[%s2 + $0x198] sm:$0xff]
        %v900 = vld [vmem:[%s2 + $0x1b8] sm:$0xff]
        %v901 = vld [vmem:[%s2 + $0x1d8] sm:$0xff]
        %v902 = vld [vmem:[%s2 + $0x1f8] sm:$0xff]
        %904 = vset.pattern.permute.xlu0 0
        %905 = vperm.xlu0 %904, %v887
        %v906 = vpop.permute.xlu0 %905
        %909 = vset.pattern.permute.xlu0 0
        %910 = vperm.xlu0 %909, %v888
        %v911 = vpop.permute.xlu0 %910
        %914 = vset.pattern.permute.xlu0 0
        %915 = vperm.xlu0 %914, %v889
        %v916 = vpop.permute.xlu0 %915
        %919 = vset.pattern.permute.xlu0 0
        %920 = vperm.xlu0 %919, %v890
        %v921 = vpop.permute.xlu0 %920
        %924 = vset.pattern.permute.xlu0 0
        %925 = vperm.xlu0 %924, %v891
        %v926 = vpop.permute.xlu0 %925
        %929 = vset.pattern.permute.xlu0 0
        %930 = vperm.xlu0 %929, %v892
        %v931 = vpop.permute.xlu0 %930
        %934 = vset.pattern.permute.xlu0 0
        %935 = vperm.xlu0 %934, %v893
        %v936 = vpop.permute.xlu0 %935
        %939 = vset.pattern.permute.xlu0 0
        %940 = vperm.xlu0 %939, %v894
        %v941 = vpop.permute.xlu0 %940
        %944 = vset.pattern.permute.xlu0 0
        %945 = vperm.xlu0 %944, %v895
        %v946 = vpop.permute.xlu0 %945
        %949 = vset.pattern.permute.xlu0 0
        %950 = vperm.xlu0 %949, %v896
        %v951 = vpop.permute.xlu0 %950
        %954 = vset.pattern.permute.xlu0 0
        %955 = vperm.xlu0 %954, %v897
        %v956 = vpop.permute.xlu0 %955
        %959 = vset.pattern.permute.xlu0 0
        %960 = vperm.xlu0 %959, %v898
        %v961 = vpop.permute.xlu0 %960
        %964 = vset.pattern.permute.xlu0 0
        %965 = vperm.xlu0 %964, %v899
        %v966 = vpop.permute.xlu0 %965
        %969 = vset.pattern.permute.xlu0 0
        %970 = vperm.xlu0 %969, %v900
        %v971 = vpop.permute.xlu0 %970
        %974 = vset.pattern.permute.xlu0 0
        %975 = vperm.xlu0 %974, %v901
        %v976 = vpop.permute.xlu0 %975
        %979 = vset.pattern.permute.xlu0 0
        %980 = vperm.xlu0 %979, %v902
        %v981 = vpop.permute.xlu0 %980
        %v983 = vmul.f32 %v871, %v906
        %v984 = vmul.f32 %v872, %v911
        %v985 = vmul.f32 %v873, %v916
        %v986 = vmul.f32 %v874, %v921
        %v987 = vmul.f32 %v875, %v926
        %v988 = vmul.f32 %v876, %v931
        %v989 = vmul.f32 %v877, %v936
        %v990 = vmul.f32 %v878, %v941
        %v991 = vmul.f32 %v879, %v946
        %v992 = vmul.f32 %v880, %v951
        %v993 = vmul.f32 %v881, %v956
        %v994 = vmul.f32 %v882, %v961
        %v995 = vmul.f32 %v883, %v966
        %v996 = vmul.f32 %v884, %v971
        %v997 = vmul.f32 %v885, %v976
        %v998 = vmul.f32 %v886, %v981
        %v999 = vadd.f32 %v983, %v984
        %v1000 = vadd.f32 %v999, %v985
        %v1001 = vadd.f32 %v1000, %v986
        %v1002 = vadd.f32 %v1001, %v987
        %v1003 = vadd.f32 %v1002, %v988
        %v1004 = vadd.f32 %v1003, %v989
        %v1005 = vadd.f32 %v1004, %v990
        %v1006 = vadd.f32 %v1005, %v991
        %v1007 = vadd.f32 %v1006, %v992
        %v1008 = vadd.f32 %v1007, %v993
        %v1009 = vadd.f32 %v1008, %v994
        %v1010 = vadd.f32 %v1009, %v995
        %v1011 = vadd.f32 %v1010, %v996
        %v1012 = vadd.f32 %v1011, %v997
        %v1013 = vadd.f32 %v1012, %v998
        %v1014 = vrot.slane %v1013, 4
        %v1015 = vadd.f32 %v1013, %v1014
        %v1016 = vrot.slane %v1015, 2
        %v1017 = vadd.f32 %v1015, %v1016
        %v1018 = vrot.slane %v1017, 1
        %v1019 = vadd.f32 %v1017, %v1018
        %v1020 = vld [vmem:[%s3] sm:$0x1]
        %1022 = vset.pattern.permute.xlu0 2
        %1023 = vperm.xlu0 %1022, %v1020
        %v1024 = vpop.permute.xlu0 %1023
        %v1026 = vadd.f32 %v1019, %v1024
        %1027 = vst [vmem:[%s403] sm:$0x1] %v1026
        %p1028 = scmp.lt.s32.totalorder %s15, 2
        %s1029 = scalar_select %p1028, %s15, 2
        %s1030 = scalar_lea.vmem %s4, %s1029
        // Predicated region
        $region113: #{fc_late_action_saq_forward.1} parent=103 // pred_check
          %p1031 = pneg %p127
        $region114: #{fc_late_action_saq_forward.1} parent=103 // pred_check_branch
          %1033 = sbr.rel (%p1031) target = $region116
        $region115: #{fc_late_action_saq_forward.1} parent=103 // pred_region
          _
        $region116: #{fc_late_action_saq_forward.1} parent=103 // pred_fallthru
          _
      $region104: #{fc_late_action_saq_forward.1} parent=5 // pred_fallthru
        _
      %p1034 = scmp.le.s32.totalorder 2, %s10
      // Predicated region
      $region117: #{fc_late_action_saq_forward.1} parent=5 // pred_check
        %p1035 = pneg %p1034
      $region118: #{fc_late_action_saq_forward.1} parent=5 // pred_check_branch
        %1037 = sbr.rel (%p1035) target = $region120
      $region119: #{fc_late_action_saq_forward.1} parent=5 // pred_region
        %s1038 = ssub.s32 %s10, 2
        // Predicated region
        $region121: #{fc_late_action_saq_forward.1} parent=119 // pred_check
          %p1039 = pneg %p133
        $region122: #{fc_late_action_saq_forward.1} parent=119 // pred_check_branch
          %1041 = sbr.rel (%p1039) target = $region124
        $region123: #{fc_late_action_saq_forward.1} parent=119 // pred_region
          %p1042 = scmp.lt.s32.totalorder %s16, 2
          %s1043 = scalar_select %p1042, %s16, 2
          %s1044 = scalar_lea.vmem %s4, %s1043
        $region124: #{fc_late_action_saq_forward.1} parent=119 // pred_fallthru
          _
      $region120: #{fc_late_action_saq_forward.1} parent=5 // pred_fallthru
        _
    $region6: #{fc_late_action_saq_forward.1} parent=1 // loop_footer
      %s14 = sadd.s32 1, %s10
    $region7: #{fc_late_action_saq_forward.1} parent=1 // loop_footer_branch
      %9 = sbr.rel target = $region3
    $region8: #{fc_late_action_saq_forward.1} parent=1 // loop_exit
      _

</llo_original>
